<compile_context>
chip_gen: v5e
topology: v5e:2x2
jax: 0.10.0
libtpu: 0.0.40
codegen_flags: <defaults>
</compile_context>

<pallas_src>
import functools

import jax
import jax.numpy as jnp
from jax.experimental import pallas as pl
from jax.experimental.pallas import tpu as pltpu


def cin_kernel(x_ref, gb_ref, o_ref, *, single_pass: bool):
    # x_ref  : (tR, T)  rows = flattened (batch * channel) instances
    # gb_ref : (tR, 2)  column 0 = gamma, column 1 = beta (precomputed, f32)
    x = x_ref[...]
    gamma = gb_ref[:, 0:1]                                  # (tR, 1)
    beta = gb_ref[:, 1:2]                                   # (tR, 1)

    inv_t = jnp.float32(1.0 / x_ref.shape[-1])
    xf = x.astype(jnp.float32)

    if single_pass:
        # E[x^2] - E[x]^2 : one full-tile pass fewer, slightly different
        # numerics than the PyTorch two-pass form (opt-in only).
        s1 = jnp.sum(xf, axis=-1, keepdims=True)
        s2 = jnp.sum(xf * xf, axis=-1, keepdims=True)
        u = s1 * inv_t
        var = s2 * inv_t - u * u
    else:
        # Two-pass centered variance: exact parity with the reference.
        u = jnp.sum(xf, axis=-1, keepdims=True) * inv_t     # (tR, 1)
        xc = xf - u
        var = jnp.sum(xc * xc, axis=-1, keepdims=True) * inv_t

    # rsqrt -> EUP slot; fold gamma into the scale and the mean into the
    # shift so the per-element epilogue is one multiply + one add on x.
    scale = gamma * jax.lax.rsqrt(var + 1e-8)               # (tR, 1)
    shift = beta - u * scale                                # (tR, 1)

    if x.dtype == jnp.float32:
        out = xf * scale + shift
    else:
        # Sub-f32 inputs: stats were accumulated in f32; run the epilogue in
        # the native dtype to halve vld/vst bytes and vreg pressure.
        out = x * scale.astype(x.dtype) + shift.astype(x.dtype)
    o_ref[...] = out.astype(o_ref.dtype)


def _vmem_budgets():
    """Tile-chooser budget and scoped-VMEM limit, generation-aware."""
    budget, limit = 24 << 20, 32 << 20          # safe on v7x (64 MiB physical)
    try:
        info = pltpu.get_tpu_info()
        cap = getattr(info, "vmem_capacity_bytes", None) or getattr(
            info, "vmem_bytes", None
        )
        if cap is not None and cap >= 100 * 1024 * 1024:
            # v5e / v6e: 128 MiB physical VMEM -> bigger blocks, fewer steps.
            budget, limit = 48 << 20, 64 << 20
    except Exception:
        pass                                     # keep conservative defaults
    return budget, limit


def _choose_row_tile(R, T, dtype, budget_bytes):
    """Largest row tile (multiple of the sublane quantum) whose double-buffered
    in/out tiles + f32 temporaries stay under the chooser budget, while keeping
    at least 2 grid steps so both v7x TensorCores get work."""
    itemsize = jnp.dtype(dtype).itemsize
    sublane = {4: 8, 2: 16, 1: 32}.get(itemsize, 8)
    if R <= sublane:
        return R
    # 2x in + 2x out buffers in native dtype, plus f32 temporaries per row.
    per_row = T * (4 * itemsize + 2 * 4) + 32
    tr = budget_bytes // max(per_row, 1)
    tr = max(sublane, (min(tr, R) // sublane) * sublane)
    tr = min(tr, R)
    if pl.cdiv(R, tr) < 2:
        # Split so the single "parallel" axis has >= 2 steps (v7x 2-TC sharding;
        # harmless on single-TC v5e/v6e).
        half = pl.cdiv(R, 2)
        tr = min(R, max(sublane, pl.cdiv(half, sublane) * sublane))
    return tr


def conditional_instance_norm(x, c, w_gamma, b_gamma, w_beta, b_beta,
                              *, single_pass=False):
    """x: (B, C, T), c: (B, S), w_*: (C, S) [nn.Linear weight], b_*: (C,)."""
    B, C, T = x.shape
    R = B * C

    # Hoist the conditional affine parameters out of the kernel: two tiny XLA
    # matmuls, then pack gamma/beta into a single (R, 2) side input so each
    # grid step issues one small DMA instead of two.
    gamma = (c @ w_gamma.T + b_gamma).astype(jnp.float32).reshape(R, 1)
    beta = (c @ w_beta.T + b_beta).astype(jnp.float32).reshape(R, 1)
    gb = jnp.concatenate([gamma, beta], axis=1)             # (R, 2)

    # Flatten batch*channel: free reshape on a contiguous array; the reduction
    # axis T stays last (lane axis).
    x2 = x.reshape(R, T)

    budget, vmem_limit = _vmem_budgets()
    tR = _choose_row_tile(R, T, x.dtype, budget)
    # TODO(synk): add a T-tiled accumulator path (pl.when init/finalize) for the
    # regime where even one sublane-quantum of rows x full T exceeds the VMEM
    # budget (very long T on v7x).

    grid = (pl.cdiv(R, tR),)

    out = pl.pallas_call(
        functools.partial(cin_kernel, single_pass=single_pass),
        out_shape=jax.ShapeDtypeStruct((R, T), x.dtype),
        grid_spec=pltpu.PrefetchScalarGridSpec(
            num_scalar_prefetch=0,
            grid=grid,
            in_specs=[
                pl.BlockSpec((tR, T), lambda i: (i, 0)),    # x rows
                pl.BlockSpec((tR, 2), lambda i: (i, 0)),    # packed gamma/beta
            ],
            out_specs=pl.BlockSpec((tR, T), lambda i: (i, 0)),
        ),
        compiler_params=pltpu.CompilerParams(
            dimension_semantics=("parallel",),
            vmem_limit_bytes=vmem_limit,
        ),
    )(x2, gb)
    return out.reshape(B, C, T)


def cin_reference(x, c, w_gamma, b_gamma, w_beta, b_beta):
    """Pure-JAX reference matching the PyTorch forward exactly."""
    u = jnp.mean(x, axis=2, keepdims=True)
    var = jnp.mean((x - u) * (x - u), axis=2, keepdims=True)
    std = jnp.sqrt(var + 1e-8)
    gamma = (c @ w_gamma.T + b_gamma)[:, :, None]
    beta = (c @ w_beta.T + b_beta)[:, :, None]
    return (x - u) / std * gamma + beta


if __name__ == "__main__":
    # Small shapes consistent with the module: batch=2, dim_in=4, time=16, style_num=8.
    B, C, T, S = 2, 4, 16, 8

    key = jax.random.PRNGKey(0)
    kx, kc, k1, k2, k3, k4 = jax.random.split(key, 6)

    x = jax.random.normal(kx, (B, C, T), dtype=jnp.float32)
    c = jax.random.normal(kc, (B, S), dtype=jnp.float32)

    # Deterministic nn.Linear-style init: U(-1/sqrt(fan_in), 1/sqrt(fan_in)).
    bound = 1.0 / (S ** 0.5)
    w_gamma = jax.random.uniform(k1, (C, S), jnp.float32, -bound, bound)
    b_gamma = jax.random.uniform(k2, (C,), jnp.float32, -bound, bound)
    w_beta = jax.random.uniform(k3, (C, S), jnp.float32, -bound, bound)
    b_beta = jax.random.uniform(k4, (C,), jnp.float32, -bound, bound)

    out = conditional_instance_norm(x, c, w_gamma, b_gamma, w_beta, b_beta)
    out = jax.block_until_ready(out)

    ref = cin_reference(x, c, w_gamma, b_gamma, w_beta, b_beta)
    assert out.shape == (B, C, T)
    assert jnp.allclose(out, ref, atol=1e-5, rtol=1e-5), "mismatch vs reference"

    print("KERNEL_OK")
</pallas_src>

<mosaic_0001>
module attributes {stable_mosaic.version = 11 : i64} {
  func.func @cin_kernel(%arg0: i32, %arg1: memref<8x16xf32, #tpu.memory_space<vmem>>, %arg2: memref<8x2xf32, #tpu.memory_space<vmem>>, %arg3: memref<8x16xf32, #tpu.memory_space<vmem>>) attributes {dimension_semantics = [#tpu.dimension_semantics<parallel>], iteration_bounds = array<i64: 1>, scalar_prefetch = 0 : i64, scratch_operands = 0 : i64, tpu.core_type = #tpu.core_type<tc>, window_params = [{transform_indices = @transform_0, window_bounds = array<i64: 8, 16>}, {transform_indices = @transform_1, window_bounds = array<i64: 8, 2>}, {transform_indices = @transform_2, window_bounds = array<i64: 8, 16>}]} {
    %c0 = arith.constant 0 : index
    %c0_0 = arith.constant 0 : index
    %0 = vector.load %arg1[%c0, %c0_0] : memref<8x16xf32, #tpu.memory_space<vmem>>, vector<8x16xf32>
    %c0_1 = arith.constant 0 : index
    %c0_2 = arith.constant 0 : index
    %1 = vector.load %arg2[%c0_1, %c0_2] : memref<8x2xf32, #tpu.memory_space<vmem>>, vector<8x1xf32>
    %c0_3 = arith.constant 0 : index
    %c1 = arith.constant 1 : index
    %2 = vector.load %arg2[%c0_3, %c1] : memref<8x2xf32, #tpu.memory_space<vmem>>, vector<8x1xf32>
    %cst = arith.constant dense<0.000000e+00> : vector<8xf32>
    %3 = vector.multi_reduction <add>, %0, %cst [1] : vector<8x16xf32> to vector<8xf32>
    %4 = vector.shape_cast %3 : vector<8xf32> to vector<8x1xf32>
    %cst_4 = arith.constant 6.250000e-02 : f32
    %5 = vector.broadcast %cst_4 : f32 to vector<8x1xf32>
    %6 = arith.mulf %4, %5 : vector<8x1xf32>
    %7 = vector.broadcast %6 : vector<8x1xf32> to vector<8x16xf32>
    %8 = arith.subf %0, %7 : vector<8x16xf32>
    %9 = arith.mulf %8, %8 : vector<8x16xf32>
    %cst_5 = arith.constant dense<0.000000e+00> : vector<8xf32>
    %10 = vector.multi_reduction <add>, %9, %cst_5 [1] : vector<8x16xf32> to vector<8xf32>
    %11 = vector.shape_cast %10 : vector<8xf32> to vector<8x1xf32>
    %cst_6 = arith.constant 6.250000e-02 : f32
    %12 = vector.broadcast %cst_6 : f32 to vector<8x1xf32>
    %13 = arith.mulf %11, %12 : vector<8x1xf32>
    %cst_7 = arith.constant 9.99999993E-9 : f32
    %14 = vector.broadcast %cst_7 : f32 to vector<8x1xf32>
    %15 = arith.addf %13, %14 : vector<8x1xf32>
    %16 = math.rsqrt %15 : vector<8x1xf32>
    %17 = arith.mulf %1, %16 : vector<8x1xf32>
    %18 = arith.mulf %6, %17 : vector<8x1xf32>
    %19 = arith.subf %2, %18 : vector<8x1xf32>
    %20 = vector.broadcast %17 : vector<8x1xf32> to vector<8x16xf32>
    %21 = arith.mulf %0, %20 : vector<8x16xf32>
    %22 = vector.broadcast %19 : vector<8x1xf32> to vector<8x16xf32>
    %23 = arith.addf %21, %22 : vector<8x16xf32>
    %c0_8 = arith.constant 0 : index
    %c0_9 = arith.constant 0 : index
    %24 = vector.load %arg3[%c0_8, %c0_9] : memref<8x16xf32, #tpu.memory_space<vmem>>, vector<8x16xf32>
    tpu.vector_store %arg3[%c0_8, %c0_9], %23 {strides = array<i32>} : memref<8x16xf32, #tpu.memory_space<vmem>>, vector<8x16xf32>,
    return
  }
  func.func @transform_0(%arg0: i32) -> (i32, i32) {
    %c0_i32 = arith.constant 0 : i32
    %c0_i32_0 = arith.constant 0 : i32
    return %arg0, %c0_i32 : i32, i32
  }
  func.func @transform_1(%arg0: i32) -> (i32, i32) {
    %c0_i32 = arith.constant 0 : i32
    %c0_i32_0 = arith.constant 0 : i32
    return %arg0, %c0_i32 : i32, i32
  }
  func.func @transform_2(%arg0: i32) -> (i32, i32) {
    %c0_i32 = arith.constant 0 : i32
    %c0_i32_0 = arith.constant 0 : i32
    return %arg0, %c0_i32 : i32, i32
  }
}

</mosaic_0001>

<llo_original>
// kernel: tpu_custom_call.1
$region0: #{tpu_custom_call.1}
  #allocation0 [shape = 'u32[]', space=smem, size = 0x4, offset = 0x4, fixed_abs, tag = 'smem constant byte address 0x4 - core index']
  #allocation1 [shape = 'u32[72,128]{1,0:T(1,128)}', space=vmem, size = 0x9000, scoped, tag = 'internal scratch']
  %s0 = inlined_call_operand.vmem [shape: f32[8,16], index: 0, kind: input, shape index: {}]
  %s1 = inlined_call_operand.vmem [shape: f32[8,2], index: 1, kind: input, shape index: {}]
  %s2 = inlined_call_operand.hbm [shape: f32[8,16], index: 2, kind: output, shape index: {}]
  %s3 = sld [smem:[#allocation0]]
  $region18: #{tpu_custom_call.1} parent=0
    _
  %s5 = ssub.s32 1, %s3
  %s6 = scalar_select 0, %s5, %s3
  $region1: #{tpu_custom_call.1} parent=0
    #allocation2 [shape = 'u8[4096]{0}', space=vmem, size = 0x1000, scoped, tag = 'output window, operand 0, single buffered']
    #allocation3 [shape = 's32[1]{0}', space=sflag, size = 0x4, scoped, tag = 'scoped memory for tpu_custom_call.1']
    %7 = vsyncpa [#allocation3], 0
    // Predicated region
    $region2: #{tpu_custom_call.1} parent=1 // pred_check
      _
    $region3: #{tpu_custom_call.1} parent=1 // pred_check_branch
      %9 = sbr.rel (0) target = $region5
    $region4: #{tpu_custom_call.1} parent=1 // pred_region
      _
    $region5: #{tpu_custom_call.1} parent=1 // pred_fallthru
      _
    // Predicated region
    $region6: #{tpu_custom_call.1} parent=1 // pred_check
      _
    $region7: #{tpu_custom_call.1} parent=1 // pred_check_branch
      %11 = sbr.rel (0) target = $region9
    $region8: #{tpu_custom_call.1} parent=1 // pred_region
      _
    $region9: #{tpu_custom_call.1} parent=1 // pred_fallthru
      _
    %v12 = vld [vmem:[%s0] sm:$0xff]
    %v13 = vld [vmem:[%s1] sm:$0xff]
    %vm14 = vcmask 130048
    %v15 = vsel %vm14, %v12, 0.0
    %16 = vadd.xlane.f32.xlu0 %v15
    %v17 = vpop.xlane.xlu0 %16
    %v18 = vmul.f32 %v17, 0.0625
    %v19 = vsub.f32 %v12, %v18
    %v20 = vmul.f32 %v19, %v19
    %v21 = vsel %vm14, %v20, 0.0
    %22 = vadd.xlane.f32.xlu0 %v21
    %v23 = vpop.xlane.xlu0 %22
    %v24 = vmul.f32 %v23, 0.0625
    %v25 = vadd.f32 %v24, 1e-08
    %v26 = vrsqrt.pop %v25
    %v27 = vmul.f32 %v26, %v25
    %v28 = vmul.f32 %v27, %v26
    %v29 = vmul.f32 0.5, %v28
    %v30 = vsub.f32 1.5, %v29
    %v31 = vmul.f32 %v26, %v30
    %vm32 = vweird.f32 %v25
    %vm33 = vweird.f32 %v26
    %vm34 = vmor %vm32, %vm33
    %v35 = vsel %vm34, %v26, %v31
    %v36 = vmul.f32 %v13, %v35
    %v37 = vmul.f32 %v18, %v36
    %39 = vrot.lane.b32.xlu0 %v37, 1
    %v40 = vpop.permute.xlu0 %39
    %v42 = vsub.f32 %v13, %v40
    %44 = vset.pattern.permute.xlu0 0
    %45 = vperm.xlu0 %44, %v36
    %v46 = vpop.permute.xlu0 %45
    %v48 = vmul.f32 %v12, %v46
    %50 = vset.pattern.permute.xlu0 1
    %51 = vperm.xlu0 %50, %v42
    %v52 = vpop.permute.xlu0 %51
    %v54 = vadd.f32 %v48, %v52
    %55 = vst.msk [vmem:[#allocation2] sm:$0xff] %vm14, %v54
    // Predicated region
    $region10: #{tpu_custom_call.1} parent=1 // pred_check
      _
    $region11: #{tpu_custom_call.1} parent=1 // pred_check_branch
      %57 = sbr.rel (0) target = $region13
    $region12: #{tpu_custom_call.1} parent=1 // pred_region
      %59 = vsyncadd [#allocation3], 0
      %s61 = sshll.u32 [#allocation2], 4
      %s62 = int_to_ptr.vmem [resolvable:$true] %s61
      %s63 = sshll.u32 %s2, 4
      %s64 = int_to_ptr.hbm [resolvable:$true] %s63
      %66 = dma.vmem_to_hbm [thread:$0]  %s62, 128, %s64, [#allocation3]
    $region13: #{tpu_custom_call.1} parent=1 // pred_fallthru
      _
    // Predicated region
    $region14: #{tpu_custom_call.1} parent=1 // pred_check
      _
    $region15: #{tpu_custom_call.1} parent=1 // pred_check_branch
      %68 = sbr.rel (0) target = $region17
    $region16: #{tpu_custom_call.1} parent=1 // pred_region
      %70 = dma.done [#allocation3], 128
    $region17: #{tpu_custom_call.1} parent=1 // pred_fallthru
      _
    %71 = vsyncpa [#allocation3], 1

</llo_original>
